<compile_context>
chip_gen: v5e
topology: v5e:2x2
jax: 0.10.0
libtpu: 0.0.40
codegen_flags: <defaults>
</compile_context>

<pallas_src>
import functools
import math

import jax
import jax.numpy as jnp
from jax.experimental import pallas as pl
from jax.experimental.pallas import tpu as pltpu


def _patch_merging_kernel(x_ref, w0_ref, w1_ref, cs_ref, bias_ref, o_ref, *,
                          eps, inv_c4):
    # x_ref: (tbh, 2, wh, 2C)  -- one contiguous DMA; h2 slices are free.
    tbh, _, wh, c2 = x_ref.shape
    rows = tbh * wh

    # Raw (bf16) tiles that feed the MXU; LayerNorm is folded into the epilogue.
    a2 = x_ref[:, 0, :, :].astype(jnp.bfloat16).reshape(rows, c2)
    b2 = x_ref[:, 1, :, :].astype(jnp.bfloat16).reshape(rows, c2)

    # LayerNorm stats over the merged 4C channel (both halves jointly), f32
    # accumulation.  Computed from the same quantized values used in the matmul
    # so the mean-subtraction factorization below is consistent.
    af = a2.astype(jnp.float32)
    s = jnp.sum(af, axis=-1, keepdims=True)
    ss = jnp.sum(af * af, axis=-1, keepdims=True)
    del af
    bf = b2.astype(jnp.float32)
    s = s + jnp.sum(bf, axis=-1, keepdims=True)
    ss = ss + jnp.sum(bf * bf, axis=-1, keepdims=True)
    del bf

    mean = s * inv_c4                         # (rows, 1)
    # One-pass variance (E[x^2] - mean^2); documented deviation from two-pass.
    var = ss * inv_c4 - mean * mean
    inv = jax.lax.rsqrt(var + eps)            # (rows, 1)

    # bf16 MXU matmuls, f32 accumulation.
    acc = jnp.dot(a2, w0_ref[...], preferred_element_type=jnp.float32)
    acc = acc + jnp.dot(b2, w1_ref[...], preferred_element_type=jnp.float32)

    # LN + affine folded epilogue (2C_out-wide, half the width of the inputs):
    #   out = inv*(z@W_eff) - (inv*mean)*colsum(W_eff) + beta@W.T
    out = inv * acc - (inv * mean) * cs_ref[...] + bias_ref[...]
    o_ref[...] = out.astype(o_ref.dtype)      # lane-dense 2-D store, no reshape


def _prepare_params(gamma, beta, w_linear, C):
    """Fold LayerNorm affine into the reduction weight; split by h2; colsum."""
    # TODO(synk): in a real model, precompute these folded weights once at load time.
    c2_out = w_linear.shape[0]                                  # 2C
    w_eff = gamma[:, None].astype(jnp.float32) * w_linear.T.astype(jnp.float32)
    # merged channel k = w2*2C + h2*C + c -> dims (w2, h2, c, out)
    w4 = w_eff.reshape(2, 2, C, c2_out)
    w_h0 = w4[:, 0].reshape(2 * C, c2_out).astype(jnp.bfloat16)  # rows: w2*C + c
    w_h1 = w4[:, 1].reshape(2 * C, c2_out).astype(jnp.bfloat16)
    # Column sums of the (bf16-rounded) effective weight, kept in f32 so the
    # epilogue's mean subtraction matches the actual MXU weights.
    colsum = (w_h0.astype(jnp.float32) + w_h1.astype(jnp.float32)
              ).sum(axis=0, keepdims=True)                       # (1, 2C_out)
    bias = (beta.astype(jnp.float32) @ w_linear.T.astype(jnp.float32)
            ).reshape(1, c2_out)                                 # (1, 2C_out)
    return w_h0, w_h1, colsum, bias


def patch_merging(x, gamma, beta, w_linear, *, eps=1e-5):
    """x: (B, H, W, C); gamma/beta: (4C,); w_linear: (2C, 4C) (PyTorch layout)."""
    B, H, W, C = x.shape
    assert H % 2 == 0 and W % 2 == 0
    c2 = 2 * C
    c2_out = w_linear.shape[0]
    wh = W // 2
    n_bh = B * (H // 2)

    # Pure bitcast reshape (contiguous split/merge), no data movement:
    x5 = x.reshape(n_bh, 2, wh, c2)
    w_h0, w_h1, colsum, bias = _prepare_params(gamma, beta, w_linear, C)

    # ---- VMEM-budget-driven row tile, adapted per chip generation -----------
    in_b = x.dtype.itemsize
    out_b = x.dtype.itemsize
    per_tbh = (2 * (2 * wh * c2 * in_b)        # input block, double buffered
               + 2 * (wh * c2_out * out_b)     # output block, double buffered
               + wh * c2 * (2 * 2 + 4)         # bf16 a2/b2 + one live f32 cast
               + wh * c2_out * (4 + 4))        # f32 accumulator + epilogue temp
    weight_bytes = 2 * (2 * c2 * c2_out * 2) + 2 * (2 * c2_out * 4)  # dbl-buffered
    # TODO(synk): mark the resident weight/colsum/bias specs pipeline_mode=
    # pl.Buffered(1) (constant index map) once guaranteed on the target jax
    # version — halves weight VMEM for large C on v7x.

    try:
        vmem_cap = int(pltpu.get_tpu_info().vmem_capacity_bytes)
    except Exception:
        vmem_cap = 64 * 1024 * 1024            # conservative (v7x) fallback
    if vmem_cap >= 128 * 1024 * 1024:          # v5e / v6e: 128 MiB physical
        vmem_limit = 96 * 1024 * 1024
    else:                                      # v7x: 64 MiB physical
        vmem_limit = 32 * 1024 * 1024
    budget = max(per_tbh, vmem_limit // 2 - weight_bytes)

    # Biggest tile that fits the budget, capped so tbh*wh lands in the 1K-4K
    # merged-row range when the problem is large.
    tbh = max(1, min(budget // per_tbh, max(1, 4096 // max(wh, 1)), n_bh))
    # Never collapse the parallel grid to one step (v7x: 2 TensorCores share
    # it); prefer >= 8 steps when blocks still keep >= ~512 merged rows.
    if n_bh >= 8 and pl.cdiv(n_bh, 8) * wh >= 512:
        tbh = min(tbh, pl.cdiv(n_bh, 8))
    elif n_bh >= 2:
        tbh = min(tbh, pl.cdiv(n_bh, 2))
    # Keep the flattened output block's sublane dim (tbh*wh) 8-aligned.
    align = 8 // math.gcd(wh, 8)
    if tbh % align:
        tbh = min(n_bh, ((tbh + align - 1) // align) * align)
    tbh = int(tbh)
    grid = (pl.cdiv(n_bh, tbh),)

    kernel = functools.partial(_patch_merging_kernel,
                               eps=float(eps), inv_c4=1.0 / (4 * C))

    out2d = pl.pallas_call(
        kernel,
        out_shape=jax.ShapeDtypeStruct((n_bh * wh, c2_out), x.dtype),
        grid=grid,
        in_specs=[
            # One contiguous HBM->VMEM DMA per step (both h2 halves together).
            pl.BlockSpec((tbh, 2, wh, c2), lambda i: (i, 0, 0, 0)),
            pl.BlockSpec((c2, c2_out), lambda i: (0, 0)),   # W_h0 (resident)
            pl.BlockSpec((c2, c2_out), lambda i: (0, 0)),   # W_h1 (resident)
            pl.BlockSpec((1, c2_out), lambda i: (0, 0)),    # colsum(W_eff)
            pl.BlockSpec((1, c2_out), lambda i: (0, 0)),    # bias = beta @ W.T
        ],
        # Lane-dense 2-D output block: the f32 accumulator is stored directly.
        out_specs=pl.BlockSpec((tbh * wh, c2_out), lambda i: (i, 0)),
        compiler_params=pltpu.CompilerParams(
            dimension_semantics=("parallel",),
            vmem_limit_bytes=vmem_limit,
        ),
    )(x5, w_h0, w_h1, colsum, bias)

    # Pure reshape back to (B, H/2, W/2, 2C_out).
    return out2d.reshape(B, H // 2, W // 2, c2_out)


def patch_merging_ref(x, gamma, beta, w_linear, *, eps=1e-5):
    """Pure-JAX f32 reference matching the PyTorch module."""
    B, H, W, C = x.shape
    xr = x.reshape(B, H // 2, 2, W // 2, 2, C)
    xr = jnp.transpose(xr, (0, 1, 3, 4, 2, 5)).reshape(B, H // 2, W // 2, 4 * C)
    xf = xr.astype(jnp.float32)
    mean = jnp.mean(xf, axis=-1, keepdims=True)
    var = jnp.mean((xf - mean) ** 2, axis=-1, keepdims=True)
    xn = (xf - mean) * jax.lax.rsqrt(var + eps)
    y = xn * gamma.astype(jnp.float32) + beta.astype(jnp.float32)
    return (y @ w_linear.T.astype(jnp.float32)).astype(x.dtype)


if __name__ == "__main__":
    key = jax.random.PRNGKey(0)
    k_x, k_g, k_b, k_w = jax.random.split(key, 4)

    # --- small test (dim = C = 4 -> LayerNorm(16), Linear(16 -> 8)) ----------
    B, H, W, C = 2, 16, 16, 4
    x = jax.random.normal(k_x, (B, H, W, C), dtype=jnp.float32)
    gamma = 1.0 + 0.01 * jax.random.normal(k_g, (4 * C,), dtype=jnp.float32)
    beta = 0.01 * jax.random.normal(k_b, (4 * C,), dtype=jnp.float32)
    w_linear = jax.random.normal(k_w, (2 * C, 4 * C), dtype=jnp.float32) * 0.1

    out = jax.block_until_ready(patch_merging(x, gamma, beta, w_linear))
    ref = patch_merging_ref(x, gamma, beta, w_linear)
    assert out.shape == (B, H // 2, W // 2, 2 * C), out.shape
    # bf16 MXU inputs (f32 accumulate) vs f32 reference -> loose tolerance.
    assert jnp.allclose(out, ref, atol=2e-2, rtol=2e-2), float(
        jnp.max(jnp.abs(out - ref)))

    # --- realistic-lane-width test (Swin-ish C=96: 4C=384, 2C_out=192) -------
    B2, H2, W2, C2 = 2, 32, 32, 96
    kx2, kg2, kb2, kw2 = jax.random.split(jax.random.PRNGKey(1), 4)
    x2 = jax.random.normal(kx2, (B2, H2, W2, C2), dtype=jnp.bfloat16)
    g2 = 1.0 + 0.01 * jax.random.normal(kg2, (4 * C2,), dtype=jnp.float32)
    b2 = 0.01 * jax.random.normal(kb2, (4 * C2,), dtype=jnp.float32)
    w2 = jax.random.normal(kw2, (2 * C2, 4 * C2), dtype=jnp.float32) * 0.05

    o2 = jax.block_until_ready(patch_merging(x2, g2, b2, w2))
    r2 = patch_merging_ref(x2, g2, b2, w2)
    assert o2.shape == (B2, H2 // 2, W2 // 2, 2 * C2), o2.shape
    # bf16 weights/activations over a 384-wide contraction -> looser tolerance.
    d = jnp.abs(o2.astype(jnp.float32) - r2.astype(jnp.float32))
    assert jnp.allclose(o2.astype(jnp.float32), r2.astype(jnp.float32),
                        atol=1.2e-1, rtol=5e-2), float(jnp.max(d))

    print("KERNEL_OK")
</pallas_src>

<mosaic_0001>
module attributes {stable_mosaic.version = 11 : i64} {
  func.func @_patch_merging_kernel(%arg0: i32, %arg1: memref<8x2x8x8xf32, #tpu.memory_space<vmem>>, %arg2: memref<8x8xbf16, #tpu.memory_space<vmem>>, %arg3: memref<8x8xbf16, #tpu.memory_space<vmem>>, %arg4: memref<1x8xf32, #tpu.memory_space<vmem>>, %arg5: memref<1x8xf32, #tpu.memory_space<vmem>>, %arg6: memref<64x8xf32, #tpu.memory_space<vmem>>) attributes {dimension_semantics = [#tpu.dimension_semantics<parallel>], iteration_bounds = array<i64: 2>, scalar_prefetch = 0 : i64, scratch_operands = 0 : i64, tpu.core_type = #tpu.core_type<tc>, window_params = [{transform_indices = @transform_0, window_bounds = array<i64: 8, 2, 8, 8>}, {pipeline_mode = #tpu.pipeline_mode<synchronous>, transform_indices = @transform_1, window_bounds = array<i64: 8, 8>}, {pipeline_mode = #tpu.pipeline_mode<synchronous>, transform_indices = @transform_2, window_bounds = array<i64: 8, 8>}, {pipeline_mode = #tpu.pipeline_mode<synchronous>, transform_indices = @transform_3, window_bounds = array<i64: 1, 8>}, {pipeline_mode = #tpu.pipeline_mode<synchronous>, transform_indices = @transform_4, window_bounds = array<i64: 1, 8>}, {transform_indices = @transform_5, window_bounds = array<i64: 64, 8>}]} {
    %c0 = arith.constant 0 : index
    %c0_0 = arith.constant 0 : index
    %c0_1 = arith.constant 0 : index
    %c0_2 = arith.constant 0 : index
    %0 = vector.load %arg1[%c0, %c0_0, %c0_1, %c0_2] : memref<8x2x8x8xf32, #tpu.memory_space<vmem>>, vector<8x1x8x8xf32>
    %1 = vector.shape_cast %0 : vector<8x1x8x8xf32> to vector<8x8x8xf32>
    %2 = arith.truncf %1 : vector<8x8x8xf32> to vector<8x8x8xbf16>
    %3 = vector.shape_cast %2 : vector<8x8x8xbf16> to vector<64x8xbf16>
    %c0_3 = arith.constant 0 : index
    %c1 = arith.constant 1 : index
    %c0_4 = arith.constant 0 : index
    %c0_5 = arith.constant 0 : index
    %4 = vector.load %arg1[%c0_3, %c1, %c0_4, %c0_5] : memref<8x2x8x8xf32, #tpu.memory_space<vmem>>, vector<8x1x8x8xf32>
    %5 = vector.shape_cast %4 : vector<8x1x8x8xf32> to vector<8x8x8xf32>
    %6 = arith.truncf %5 : vector<8x8x8xf32> to vector<8x8x8xbf16>
    %7 = vector.shape_cast %6 : vector<8x8x8xbf16> to vector<64x8xbf16>
    %8 = arith.extf %3 : vector<64x8xbf16> to vector<64x8xf32>
    %cst = arith.constant dense<0.000000e+00> : vector<64xf32>
    %9 = vector.multi_reduction <add>, %8, %cst [1] : vector<64x8xf32> to vector<64xf32>
    %10 = vector.shape_cast %9 : vector<64xf32> to vector<64x1xf32>
    %11 = arith.mulf %8, %8 : vector<64x8xf32>
    %cst_6 = arith.constant dense<0.000000e+00> : vector<64xf32>
    %12 = vector.multi_reduction <add>, %11, %cst_6 [1] : vector<64x8xf32> to vector<64xf32>
    %13 = vector.shape_cast %12 : vector<64xf32> to vector<64x1xf32>
    %14 = arith.extf %7 : vector<64x8xbf16> to vector<64x8xf32>
    %cst_7 = arith.constant dense<0.000000e+00> : vector<64xf32>
    %15 = vector.multi_reduction <add>, %14, %cst_7 [1] : vector<64x8xf32> to vector<64xf32>
    %16 = vector.shape_cast %15 : vector<64xf32> to vector<64x1xf32>
    %17 = arith.addf %10, %16 : vector<64x1xf32>
    %18 = arith.mulf %14, %14 : vector<64x8xf32>
    %cst_8 = arith.constant dense<0.000000e+00> : vector<64xf32>
    %19 = vector.multi_reduction <add>, %18, %cst_8 [1] : vector<64x8xf32> to vector<64xf32>
    %20 = vector.shape_cast %19 : vector<64xf32> to vector<64x1xf32>
    %21 = arith.addf %13, %20 : vector<64x1xf32>
    %cst_9 = arith.constant 6.250000e-02 : f32
    %22 = vector.broadcast %cst_9 : f32 to vector<64x1xf32>
    %23 = arith.mulf %17, %22 : vector<64x1xf32>
    %cst_10 = arith.constant 6.250000e-02 : f32
    %24 = vector.broadcast %cst_10 : f32 to vector<64x1xf32>
    %25 = arith.mulf %21, %24 : vector<64x1xf32>
    %26 = arith.mulf %23, %23 : vector<64x1xf32>
    %27 = arith.subf %25, %26 : vector<64x1xf32>
    %cst_11 = arith.constant 9.99999974E-6 : f32
    %28 = vector.broadcast %cst_11 : f32 to vector<64x1xf32>
    %29 = arith.addf %27, %28 : vector<64x1xf32>
    %30 = math.rsqrt %29 : vector<64x1xf32>
    %c0_12 = arith.constant 0 : index
    %c0_13 = arith.constant 0 : index
    %31 = vector.load %arg2[%c0_12, %c0_13] : memref<8x8xbf16, #tpu.memory_space<vmem>>, vector<8x8xbf16>
    %cst_14 = arith.constant dense<0.000000e+00> : vector<64x8xf32>
    %32 = tpu.matmul %3, %31, %cst_14 {dimension_numbers = #tpu.dot_dimension_numbers<[1], [0], [0], [1], [0, 0, 1, 1], [], []>} : vector<64x8xbf16>, vector<8x8xbf16>, vector<64x8xf32> -> vector<64x8xf32>
    %c0_15 = arith.constant 0 : index
    %c0_16 = arith.constant 0 : index
    %33 = vector.load %arg3[%c0_15, %c0_16] : memref<8x8xbf16, #tpu.memory_space<vmem>>, vector<8x8xbf16>
    %cst_17 = arith.constant dense<0.000000e+00> : vector<64x8xf32>
    %34 = tpu.matmul %7, %33, %cst_17 {dimension_numbers = #tpu.dot_dimension_numbers<[1], [0], [0], [1], [0, 0, 1, 1], [], []>} : vector<64x8xbf16>, vector<8x8xbf16>, vector<64x8xf32> -> vector<64x8xf32>
    %35 = arith.addf %32, %34 : vector<64x8xf32>
    %36 = vector.broadcast %30 : vector<64x1xf32> to vector<64x8xf32>
    %37 = arith.mulf %36, %35 : vector<64x8xf32>
    %38 = arith.mulf %30, %23 : vector<64x1xf32>
    %c0_18 = arith.constant 0 : index
    %c0_19 = arith.constant 0 : index
    %39 = vector.load %arg4[%c0_18, %c0_19] : memref<1x8xf32, #tpu.memory_space<vmem>>, vector<1x8xf32>
    %40 = vector.broadcast %38 : vector<64x1xf32> to vector<64x8xf32>
    %41 = vector.broadcast %39 : vector<1x8xf32> to vector<64x8xf32>
    %42 = arith.mulf %40, %41 : vector<64x8xf32>
    %43 = arith.subf %37, %42 : vector<64x8xf32>
    %c0_20 = arith.constant 0 : index
    %c0_21 = arith.constant 0 : index
    %44 = vector.load %arg5[%c0_20, %c0_21] : memref<1x8xf32, #tpu.memory_space<vmem>>, vector<1x8xf32>
    %45 = vector.broadcast %44 : vector<1x8xf32> to vector<64x8xf32>
    %46 = arith.addf %43, %45 : vector<64x8xf32>
    %c0_22 = arith.constant 0 : index
    %c0_23 = arith.constant 0 : index
    %47 = vector.load %arg6[%c0_22, %c0_23] : memref<64x8xf32, #tpu.memory_space<vmem>>, vector<64x8xf32>
    tpu.vector_store %arg6[%c0_22, %c0_23], %46 {strides = array<i32>} : memref<64x8xf32, #tpu.memory_space<vmem>>, vector<64x8xf32>,
    return
  }
  func.func @transform_0(%arg0: i32) -> (i32, i32, i32, i32) {
    %c0_i32 = arith.constant 0 : i32
    %c0_i32_0 = arith.constant 0 : i32
    %c0_i32_1 = arith.constant 0 : i32
    %c0_i32_2 = arith.constant 0 : i32
    return %arg0, %c0_i32, %c0_i32_0, %c0_i32_1 : i32, i32, i32, i32
  }
  func.func @transform_1(%arg0: i32) -> (i32, i32) {
    %c0_i32 = arith.constant 0 : i32
    %c0_i32_0 = arith.constant 0 : i32
    %c0_i32_1 = arith.constant 0 : i32
    return %c0_i32, %c0_i32_0 : i32, i32
  }
  func.func @transform_2(%arg0: i32) -> (i32, i32) {
    %c0_i32 = arith.constant 0 : i32
    %c0_i32_0 = arith.constant 0 : i32
    %c0_i32_1 = arith.constant 0 : i32
    return %c0_i32, %c0_i32_0 : i32, i32
  }
  func.func @transform_3(%arg0: i32) -> (i32, i32) {
    %c0_i32 = arith.constant 0 : i32
    %c0_i32_0 = arith.constant 0 : i32
    %c0_i32_1 = arith.constant 0 : i32
    return %c0_i32, %c0_i32_0 : i32, i32
  }
  func.func @transform_4(%arg0: i32) -> (i32, i32) {
    %c0_i32 = arith.constant 0 : i32
    %c0_i32_0 = arith.constant 0 : i32
    %c0_i32_1 = arith.constant 0 : i32
    return %c0_i32, %c0_i32_0 : i32, i32
  }
  func.func @transform_5(%arg0: i32) -> (i32, i32) {
    %c0_i32 = arith.constant 0 : i32
    %c0_i32_0 = arith.constant 0 : i32
    return %arg0, %c0_i32 : i32, i32
  }
}

</mosaic_0001>

<llo_original>
// kernel: tpu_custom_call.1
$region0: #{tpu_custom_call.1}
  #allocation0 [shape = 'u32[]', space=smem, size = 0x4, offset = 0x4, fixed_abs, tag = 'smem constant byte address 0x4 - core index']
  #allocation1 [shape = 'u32[72,128]{1,0:T(1,128)}', space=vmem, size = 0x9000, scoped, tag = 'internal scratch']
  %s0 = inlined_call_operand.vmem [shape: f32[16,2,8,8], index: 0, kind: input, shape index: {}]
  %s1 = inlined_call_operand.vmem [shape: bf16[8,8], index: 1, kind: input, shape index: {}]
  %s2 = inlined_call_operand.vmem [shape: bf16[8,8], index: 2, kind: input, shape index: {}]
  %s3 = inlined_call_operand.vmem [shape: f32[1,8], index: 3, kind: input, shape index: {}]
  %s4 = inlined_call_operand.vmem [shape: f32[1,8], index: 4, kind: input, shape index: {}]
  %s5 = inlined_call_operand.vmem [shape: f32[128,8], index: 5, kind: output, shape index: {}]
  %s6 = sld [smem:[#allocation0]]
  $region53: #{tpu_custom_call.1} parent=0
    _
  %s8 = ssub.s32 1, %s6
  %s9 = scalar_select 0, %s8, %s6
  loop: start=0, step=1, limit=4
  $region2: #{tpu_custom_call.1} parent=0 // loop_pre_header
    _
  $region3: #{tpu_custom_call.1} parent=0 // loop_header
    %s11 = sphi 0, %s15
    %p12 = scmp.ge.s32.totalorder %s11, 4
    %s21 = sphi 0, %s23
    %s24 = sphi 0, %s21
    %s25 = sphi 0, %s24
    %s41 = sphi 0, %s25
    %s45 = sphi 0, %s45
    %s47 = sphi 0, %s45
    %s48 = sphi 0, %s47
    %s62 = sphi 0, %s48
    %s66 = sphi 0, %s66
    %s68 = sphi 0, %s66
    %s69 = sphi 0, %s68
    %s83 = sphi 0, %s69
    %s87 = sphi 0, %s87
    %s89 = sphi 0, %s87
    %s90 = sphi 0, %s89
    %s104 = sphi 0, %s90
    %s108 = sphi 0, %s108
    %s110 = sphi 0, %s108
    %s111 = sphi 0, %s110
    %s125 = sphi 0, %s111
    %s131 = sphi 0, %s133
    %s134 = sphi 0, %s131
    %s135 = sphi 0, %s134
    %s151 = sphi 0, %s135
  $region4: #{tpu_custom_call.1} parent=0 // loop_header_branch
    %14 = sbr.rel (%p12) target = $region8
  $region5: #{tpu_custom_call.1} parent=0 // loop_body
    %s16 = ssub.s32 %s11, 1
    %s17 = ssub.s32 %s11, 2
    %s18 = sadd.s32 %s11, 1
    %s19 = ssub.s32 %s11, %s18
    %p20 = scmp.eq.s32.totalorder %s19, 0
    %s22 = sadd.s32 %s21, 1
    %s23 = scalar_select %p20, %s21, %s22
    %p26 = pneg %p20
    %p27 = scmp.eq.s32.totalorder %s11, 1
    %p28 = por %p26, %p27
    %p29 = scmp.ne.s32.totalorder %s21, %s24
    %p30 = scmp.eq.s32.totalorder %s11, 0
    %p31 = por %p29, %p30
    %p32 = scmp.ne.s32.totalorder %s21, %s24
    %p33 = scmp.eq.s32.totalorder %s16, 1
    %p34 = por %p32, %p33
    %p35 = scmp.ne.s32.totalorder %s24, %s25
    %p36 = scmp.eq.s32.totalorder %s16, 0
    %p37 = por %p35, %p36
    %p38 = scmp.ne.s32.totalorder %s24, %s25
    %p39 = scmp.eq.s32.totalorder %s17, 1
    %p40 = por %p38, %p39
    %p42 = scmp.ne.s32.totalorder %s25, %s41
    %p43 = scmp.eq.s32.totalorder %s17, 0
    %p44 = por %p42, %p43
    %s46 = sadd.s32 %s45, 1
    %p49 = scmp.eq.s32.totalorder %s11, 1
    %p50 = scmp.ne.s32.totalorder %s45, %s47
    %p51 = scmp.eq.s32.totalorder %s11, 0
    %p52 = por %p50, %p51
    %p53 = scmp.ne.s32.totalorder %s45, %s47
    %p54 = scmp.eq.s32.totalorder %s16, 1
    %p55 = por %p53, %p54
    %p56 = scmp.ne.s32.totalorder %s47, %s48
    %p57 = scmp.eq.s32.totalorder %s16, 0
    %p58 = por %p56, %p57
    %p59 = scmp.ne.s32.totalorder %s47, %s48
    %p60 = scmp.eq.s32.totalorder %s17, 1
    %p61 = por %p59, %p60
    %p63 = scmp.ne.s32.totalorder %s48, %s62
    %p64 = scmp.eq.s32.totalorder %s17, 0
    %p65 = por %p63, %p64
    %s67 = sadd.s32 %s66, 1
    %p70 = scmp.eq.s32.totalorder %s11, 1
    %p71 = scmp.ne.s32.totalorder %s66, %s68
    %p72 = scmp.eq.s32.totalorder %s11, 0
    %p73 = por %p71, %p72
    %p74 = scmp.ne.s32.totalorder %s66, %s68
    %p75 = scmp.eq.s32.totalorder %s16, 1
    %p76 = por %p74, %p75
    %p77 = scmp.ne.s32.totalorder %s68, %s69
    %p78 = scmp.eq.s32.totalorder %s16, 0
    %p79 = por %p77, %p78
    %p80 = scmp.ne.s32.totalorder %s68, %s69
    %p81 = scmp.eq.s32.totalorder %s17, 1
    %p82 = por %p80, %p81
    %p84 = scmp.ne.s32.totalorder %s69, %s83
    %p85 = scmp.eq.s32.totalorder %s17, 0
    %p86 = por %p84, %p85
    %s88 = sadd.s32 %s87, 1
    %p91 = scmp.eq.s32.totalorder %s11, 1
    %p92 = scmp.ne.s32.totalorder %s87, %s89
    %p93 = scmp.eq.s32.totalorder %s11, 0
    %p94 = por %p92, %p93
    %p95 = scmp.ne.s32.totalorder %s87, %s89
    %p96 = scmp.eq.s32.totalorder %s16, 1
    %p97 = por %p95, %p96
    %p98 = scmp.ne.s32.totalorder %s89, %s90
    %p99 = scmp.eq.s32.totalorder %s16, 0
    %p100 = por %p98, %p99
    %p101 = scmp.ne.s32.totalorder %s89, %s90
    %p102 = scmp.eq.s32.totalorder %s17, 1
    %p103 = por %p101, %p102
    %p105 = scmp.ne.s32.totalorder %s90, %s104
    %p106 = scmp.eq.s32.totalorder %s17, 0
    %p107 = por %p105, %p106
    %s109 = sadd.s32 %s108, 1
    %p112 = scmp.eq.s32.totalorder %s11, 1
    %p113 = scmp.ne.s32.totalorder %s108, %s110
    %p114 = scmp.eq.s32.totalorder %s11, 0
    %p115 = por %p113, %p114
    %p116 = scmp.ne.s32.totalorder %s108, %s110
    %p117 = scmp.eq.s32.totalorder %s16, 1
    %p118 = por %p116, %p117
    %p119 = scmp.ne.s32.totalorder %s110, %s111
    %p120 = scmp.eq.s32.totalorder %s16, 0
    %p121 = por %p119, %p120
    %p122 = scmp.ne.s32.totalorder %s110, %s111
    %p123 = scmp.eq.s32.totalorder %s17, 1
    %p124 = por %p122, %p123
    %p126 = scmp.ne.s32.totalorder %s111, %s125
    %p127 = scmp.eq.s32.totalorder %s17, 0
    %p128 = por %p126, %p127
    %s129 = ssub.s32 %s11, %s18
    %p130 = scmp.eq.s32.totalorder %s129, 0
    %s132 = sadd.s32 %s131, 1
    %s133 = scalar_select %p130, %s131, %s132
    %p136 = pneg %p130
    %p137 = scmp.eq.s32.totalorder %s11, 1
    %p138 = por %p136, %p137
    %p139 = scmp.ne.s32.totalorder %s131, %s134
    %p140 = scmp.eq.s32.totalorder %s11, 0
    %p141 = por %p139, %p140
    %p142 = scmp.ne.s32.totalorder %s131, %s134
    %p143 = scmp.eq.s32.totalorder %s16, 1
    %p144 = por %p142, %p143
    %p145 = scmp.ne.s32.totalorder %s134, %s135
    %p146 = scmp.eq.s32.totalorder %s16, 0
    %p147 = por %p145, %p146
    %p148 = scmp.ne.s32.totalorder %s134, %s135
    %p149 = scmp.eq.s32.totalorder %s17, 1
    %p150 = por %p148, %p149
    %p152 = scmp.ne.s32.totalorder %s135, %s151
    %p153 = scmp.eq.s32.totalorder %s17, 0
    %p154 = por %p152, %p153
    %p155 = scmp.le.s32.totalorder 1, %s11
    %p156 = scmp.lt.s32.totalorder %s11, 3
    %p157 = pnand %p155, %p156
    %p158 = pneg %p157
    // Predicated region
    $region9: #{tpu_custom_call.1} parent=5 // pred_check
      _
    $region10: #{tpu_custom_call.1} parent=5 // pred_check_branch
      %160 = sbr.rel (%p157) target = $region12
    $region11: #{tpu_custom_call.1} parent=5 // pred_region
      %s161 = ssub.s32 %s11, 1
      // Predicated region
      $region13: #{tpu_custom_call.1} parent=11 // pred_check
        %p162 = pneg %p58
      $region14: #{tpu_custom_call.1} parent=11 // pred_check_branch
        %164 = sbr.rel (%p162) target = $region16
      $region15: #{tpu_custom_call.1} parent=11 // pred_region
        _
      $region16: #{tpu_custom_call.1} parent=11 // pred_fallthru
        _
      // Predicated region
      $region17: #{tpu_custom_call.1} parent=11 // pred_check
        %p165 = pneg %p79
      $region18: #{tpu_custom_call.1} parent=11 // pred_check_branch
        %167 = sbr.rel (%p165) target = $region20
      $region19: #{tpu_custom_call.1} parent=11 // pred_region
        _
      $region20: #{tpu_custom_call.1} parent=11 // pred_fallthru
        _
      // Predicated region
      $region21: #{tpu_custom_call.1} parent=11 // pred_check
        %p168 = pneg %p100
      $region22: #{tpu_custom_call.1} parent=11 // pred_check_branch
        %170 = sbr.rel (%p168) target = $region24
      $region23: #{tpu_custom_call.1} parent=11 // pred_region
        _
      $region24: #{tpu_custom_call.1} parent=11 // pred_fallthru
        _
      // Predicated region
      $region25: #{tpu_custom_call.1} parent=11 // pred_check
        %p171 = pneg %p121
      $region26: #{tpu_custom_call.1} parent=11 // pred_check_branch
        %173 = sbr.rel (%p171) target = $region28
      $region27: #{tpu_custom_call.1} parent=11 // pred_region
        _
      $region28: #{tpu_custom_call.1} parent=11 // pred_fallthru
        _
    $region12: #{tpu_custom_call.1} parent=5 // pred_fallthru
      _
    %p174 = scmp.lt.s32.totalorder %s11, 2
    // Predicated region
    $region29: #{tpu_custom_call.1} parent=5 // pred_check
      %p175 = pneg %p174
    $region30: #{tpu_custom_call.1} parent=5 // pred_check_branch
      %177 = sbr.rel (%p175) target = $region32
    $region31: #{tpu_custom_call.1} parent=5 // pred_region
      // Predicated region
      $region33: #{tpu_custom_call.1} parent=31 // pred_check
        %p178 = pneg %p31
      $region34: #{tpu_custom_call.1} parent=31 // pred_check_branch
        %180 = sbr.rel (%p178) target = $region36
      $region35: #{tpu_custom_call.1} parent=31 // pred_region
        %s181 = smul.u32 8, %s11
        %p182 = scmp.lt.s32.totalorder %s181, 15
        %s183 = scalar_select %p182, %s181, 15
        %s184 = smul.addr %s183, 2
        %s185 = smul.addr %s184, 8
        %s186 = scalar_lea.vmem %s0, %s185
        %s187 = smul.u32 8, %s11
      $region36: #{tpu_custom_call.1} parent=31 // pred_fallthru
        _
    $region32: #{tpu_custom_call.1} parent=5 // pred_fallthru
      _
    %p188 = scmp.le.s32.totalorder 1, %s11
    %p189 = scmp.lt.s32.totalorder %s11, 3
    %p190 = pnand %p188, %p189
    %p191 = pneg %p190
    // Predicated region
    $region37: #{tpu_custom_call.1} parent=5 // pred_check
      _
    $region38: #{tpu_custom_call.1} parent=5 // pred_check_branch
      %193 = sbr.rel (%p190) target = $region40
    $region39: #{tpu_custom_call.1} parent=5 // pred_region
      %s194 = ssub.s32 %s11, 1
      %s195 = smul.u32 8, %s16
      %p196 = scmp.lt.s32.totalorder %s195, 15
      %s197 = scalar_select %p196, %s195, 15
      %s198 = smul.addr %s197, 2
      %s199 = smul.addr %s198, 8
      %s200 = scalar_lea.vmem %s0, %s199
      %p201 = pneg %p37
      %p202 = pneg %p34
      %p203 = pneg %p58
      %p204 = pneg %p55
      %p205 = pneg %p79
      %p206 = pneg %p76
      %p207 = pneg %p100
      %p208 = pneg %p97
      %p209 = pneg %p121
      %p210 = pneg %p118
      %p211 = pneg %p147
      %p212 = pneg %p144
      %s213 = smul.u32 8, %s16
      %p214 = scmp.lt.s32.totalorder %s213, 15
      %s215 = scalar_select %p214, %s213, 15
      %s216 = smul.addr %s215, 8
      %s217 = scalar_lea.vmem %s5, %s216
      %s218 = smul.u32 8, %s16
      %p219 = scmp.lt.s32.totalorder %s218, 15
      %s220 = scalar_select %p219, %s218, 15
      %s221 = smul.addr %s220, 2
      %s222 = smul.addr %s221, 8
      %s223 = scalar_lea.vmem %s0, %s222
      %s224 = smul.u32 8, %s16
      %s225 = smul.u32 8, %s16
      %p226 = scmp.lt.s32.totalorder %s225, 15
      %s227 = scalar_select %p226, %s225, 15
      %s228 = smul.addr %s227, 8
      %s229 = scalar_lea.vmem %s5, %s228
      %s230 = smul.u32 8, %s16
      %v232 = vld [vmem:[%s223] sm:$0xff]
      %v233 = vld [vmem:[%s223 + $0x10] sm:$0xff]
      %v234 = vld [vmem:[%s223 + $0x20] sm:$0xff]
      %v235 = vld [vmem:[%s223 + $0x30] sm:$0xff]
      %v236 = vld [vmem:[%s223 + $0x40] sm:$0xff]
      %v237 = vld [vmem:[%s223 + $0x50] sm:$0xff]
      %v238 = vld [vmem:[%s223 + $0x60] sm:$0xff]
      %v239 = vld [vmem:[%s223 + $0x70] sm:$0xff]
      %v240 = vpack.c.bf16 %v232, %v232
      %v241 = vpack.c.bf16 %v233, %v233
      %v242 = vpack.c.bf16 %v234, %v234
      %v243 = vpack.c.bf16 %v235, %v235
      %v244 = vpack.c.bf16 %v236, %v236
      %v245 = vpack.c.bf16 %v237, %v237
      %v246 = vpack.c.bf16 %v238, %v238
      %v247 = vpack.c.bf16 %v239, %v239
      %s248 = scalar_lea.vmem %s223, 8
      %v249 = vld [vmem:[%s248] sm:$0xff]
      %v250 = vld [vmem:[%s248 + $0x10] sm:$0xff]
      %v251 = vld [vmem:[%s248 + $0x20] sm:$0xff]
      %v252 = vld [vmem:[%s248 + $0x30] sm:$0xff]
      %v253 = vld [vmem:[%s248 + $0x40] sm:$0xff]
      %v254 = vld [vmem:[%s248 + $0x50] sm:$0xff]
      %v255 = vld [vmem:[%s248 + $0x60] sm:$0xff]
      %v256 = vld [vmem:[%s248 + $0x70] sm:$0xff]
      %v257 = vpack.c.bf16 %v249, %v249
      %v258 = vpack.c.bf16 %v250, %v250
      %v259 = vpack.c.bf16 %v251, %v251
      %v260 = vpack.c.bf16 %v252, %v252
      %v261 = vpack.c.bf16 %v253, %v253
      %v262 = vpack.c.bf16 %v254, %v254
      %v263 = vpack.c.bf16 %v255, %v255
      %v264 = vpack.c.bf16 %v256, %v256
      %v265 = vunpack.c.l.bf16 %v240
      %v266 = vunpack.c.l.bf16 %v241
      %v267 = vunpack.c.l.bf16 %v242
      %v268 = vunpack.c.l.bf16 %v243
      %v269 = vunpack.c.l.bf16 %v244
      %v270 = vunpack.c.l.bf16 %v245
      %v271 = vunpack.c.l.bf16 %v246
      %v272 = vunpack.c.l.bf16 %v247
      %vm273 = vcmask 64512
      %v274 = vsel %vm273, %v265, 0.0
      %275 = vadd.xlane.f32.xlu0 %v274
      %v276 = vpop.xlane.xlu0 %275
      %v277 = vsel %vm273, %v266, 0.0
      %278 = vadd.xlane.f32.xlu0 %v277
      %v279 = vpop.xlane.xlu0 %278
      %v280 = vsel %vm273, %v267, 0.0
      %281 = vadd.xlane.f32.xlu0 %v280
      %v282 = vpop.xlane.xlu0 %281
      %v283 = vsel %vm273, %v268, 0.0
      %284 = vadd.xlane.f32.xlu0 %v283
      %v285 = vpop.xlane.xlu0 %284
      %v286 = vsel %vm273, %v269, 0.0
      %287 = vadd.xlane.f32.xlu0 %v286
      %v288 = vpop.xlane.xlu0 %287
      %v289 = vsel %vm273, %v270, 0.0
      %290 = vadd.xlane.f32.xlu0 %v289
      %v291 = vpop.xlane.xlu0 %290
      %v292 = vsel %vm273, %v271, 0.0
      %293 = vadd.xlane.f32.xlu0 %v292
      %v294 = vpop.xlane.xlu0 %293
      %v295 = vsel %vm273, %v272, 0.0
      %296 = vadd.xlane.f32.xlu0 %v295
      %v297 = vpop.xlane.xlu0 %296
      %v298 = vmul.f32 %v265, %v265
      %v299 = vmul.f32 %v266, %v266
      %v300 = vmul.f32 %v267, %v267
      %v301 = vmul.f32 %v268, %v268
      %v302 = vmul.f32 %v269, %v269
      %v303 = vmul.f32 %v270, %v270
      %v304 = vmul.f32 %v271, %v271
      %v305 = vmul.f32 %v272, %v272
      %v306 = vsel %vm273, %v298, 0.0
      %307 = vadd.xlane.f32.xlu0 %v306
      %v308 = vpop.xlane.xlu0 %307
      %v309 = vsel %vm273, %v299, 0.0
      %310 = vadd.xlane.f32.xlu0 %v309
      %v311 = vpop.xlane.xlu0 %310
      %v312 = vsel %vm273, %v300, 0.0
      %313 = vadd.xlane.f32.xlu0 %v312
      %v314 = vpop.xlane.xlu0 %313
      %v315 = vsel %vm273, %v301, 0.0
      %316 = vadd.xlane.f32.xlu0 %v315
      %v317 = vpop.xlane.xlu0 %316
      %v318 = vsel %vm273, %v302, 0.0
      %319 = vadd.xlane.f32.xlu0 %v318
      %v320 = vpop.xlane.xlu0 %319
      %v321 = vsel %vm273, %v303, 0.0
      %322 = vadd.xlane.f32.xlu0 %v321
      %v323 = vpop.xlane.xlu0 %322
      %v324 = vsel %vm273, %v304, 0.0
      %325 = vadd.xlane.f32.xlu0 %v324
      %v326 = vpop.xlane.xlu0 %325
      %v327 = vsel %vm273, %v305, 0.0
      %328 = vadd.xlane.f32.xlu0 %v327
      %v329 = vpop.xlane.xlu0 %328
      %v330 = vunpack.c.l.bf16 %v257
      %v331 = vunpack.c.l.bf16 %v258
      %v332 = vunpack.c.l.bf16 %v259
      %v333 = vunpack.c.l.bf16 %v260
      %v334 = vunpack.c.l.bf16 %v261
      %v335 = vunpack.c.l.bf16 %v262
      %v336 = vunpack.c.l.bf16 %v263
      %v337 = vunpack.c.l.bf16 %v264
      %v338 = vsel %vm273, %v330, 0.0
      %339 = vadd.xlane.f32.xlu0 %v338
      %v340 = vpop.xlane.xlu0 %339
      %v341 = vsel %vm273, %v331, 0.0
      %342 = vadd.xlane.f32.xlu0 %v341
      %v343 = vpop.xlane.xlu0 %342
      %v344 = vsel %vm273, %v332, 0.0
      %345 = vadd.xlane.f32.xlu0 %v344
      %v346 = vpop.xlane.xlu0 %345
      %v347 = vsel %vm273, %v333, 0.0
      %348 = vadd.xlane.f32.xlu0 %v347
      %v349 = vpop.xlane.xlu0 %348
      %v350 = vsel %vm273, %v334, 0.0
      %351 = vadd.xlane.f32.xlu0 %v350
      %v352 = vpop.xlane.xlu0 %351
      %v353 = vsel %vm273, %v335, 0.0
      %354 = vadd.xlane.f32.xlu0 %v353
      %v355 = vpop.xlane.xlu0 %354
      %v356 = vsel %vm273, %v336, 0.0
      %357 = vadd.xlane.f32.xlu0 %v356
      %v358 = vpop.xlane.xlu0 %357
      %v359 = vsel %vm273, %v337, 0.0
      %360 = vadd.xlane.f32.xlu0 %v359
      %v361 = vpop.xlane.xlu0 %360
      %v362 = vadd.f32 %v276, %v340
      %v363 = vadd.f32 %v279, %v343
      %v364 = vadd.f32 %v282, %v346
      %v365 = vadd.f32 %v285, %v349
      %v366 = vadd.f32 %v288, %v352
      %v367 = vadd.f32 %v291, %v355
      %v368 = vadd.f32 %v294, %v358
      %v369 = vadd.f32 %v297, %v361
      %v370 = vmul.f32 %v330, %v330
      %v371 = vmul.f32 %v331, %v331
      %v372 = vmul.f32 %v332, %v332
      %v373 = vmul.f32 %v333, %v333
      %v374 = vmul.f32 %v334, %v334
      %v375 = vmul.f32 %v335, %v335
      %v376 = vmul.f32 %v336, %v336
      %v377 = vmul.f32 %v337, %v337
      %v378 = vsel %vm273, %v370, 0.0
      %379 = vadd.xlane.f32.xlu0 %v378
      %v380 = vpop.xlane.xlu0 %379
      %v381 = vsel %vm273, %v371, 0.0
      %382 = vadd.xlane.f32.xlu0 %v381
      %v383 = vpop.xlane.xlu0 %382
      %v384 = vsel %vm273, %v372, 0.0
      %385 = vadd.xlane.f32.xlu0 %v384
      %v386 = vpop.xlane.xlu0 %385
      %v387 = vsel %vm273, %v373, 0.0
      %388 = vadd.xlane.f32.xlu0 %v387
      %v389 = vpop.xlane.xlu0 %388
      %v390 = vsel %vm273, %v374, 0.0
      %391 = vadd.xlane.f32.xlu0 %v390
      %v392 = vpop.xlane.xlu0 %391
      %v393 = vsel %vm273, %v375, 0.0
      %394 = vadd.xlane.f32.xlu0 %v393
      %v395 = vpop.xlane.xlu0 %394
      %v396 = vsel %vm273, %v376, 0.0
      %397 = vadd.xlane.f32.xlu0 %v396
      %v398 = vpop.xlane.xlu0 %397
      %v399 = vsel %vm273, %v377, 0.0
      %400 = vadd.xlane.f32.xlu0 %v399
      %v401 = vpop.xlane.xlu0 %400
      %v402 = vadd.f32 %v308, %v380
      %v403 = vadd.f32 %v311, %v383
      %v404 = vadd.f32 %v314, %v386
      %v405 = vadd.f32 %v317, %v389
      %v406 = vadd.f32 %v320, %v392
      %v407 = vadd.f32 %v323, %v395
      %v408 = vadd.f32 %v326, %v398
      %v409 = vadd.f32 %v329, %v401
      %v410 = vmul.f32 %v362, 0.0625
      %v411 = vmul.f32 %v363, 0.0625
      %v412 = vmul.f32 %v364, 0.0625
      %v413 = vmul.f32 %v365, 0.0625
      %v414 = vmul.f32 %v366, 0.0625
      %v415 = vmul.f32 %v367, 0.0625
      %v416 = vmul.f32 %v368, 0.0625
      %v417 = vmul.f32 %v369, 0.0625
      %v418 = vmul.f32 %v402, 0.0625
      %v419 = vmul.f32 %v403, 0.0625
      %v420 = vmul.f32 %v404, 0.0625
      %v421 = vmul.f32 %v405, 0.0625
      %v422 = vmul.f32 %v406, 0.0625
      %v423 = vmul.f32 %v407, 0.0625
      %v424 = vmul.f32 %v408, 0.0625
      %v425 = vmul.f32 %v409, 0.0625
      %v426 = vmul.f32 %v410, %v410
      %v427 = vmul.f32 %v411, %v411
      %v428 = vmul.f32 %v412, %v412
      %v429 = vmul.f32 %v413, %v413
      %v430 = vmul.f32 %v414, %v414
      %v431 = vmul.f32 %v415, %v415
      %v432 = vmul.f32 %v416, %v416
      %v433 = vmul.f32 %v417, %v417
      %v434 = vsub.f32 %v418, %v426
      %v435 = vsub.f32 %v419, %v427
      %v436 = vsub.f32 %v420, %v428
      %v437 = vsub.f32 %v421, %v429
      %v438 = vsub.f32 %v422, %v430
      %v439 = vsub.f32 %v423, %v431
      %v440 = vsub.f32 %v424, %v432
      %v441 = vsub.f32 %v425, %v433
      %v442 = vadd.f32 %v434, 1e-05
      %v443 = vadd.f32 %v435, 1e-05
      %v444 = vadd.f32 %v436, 1e-05
      %v445 = vadd.f32 %v437, 1e-05
      %v446 = vadd.f32 %v438, 1e-05
      %v447 = vadd.f32 %v439, 1e-05
      %v448 = vadd.f32 %v440, 1e-05
      %v449 = vadd.f32 %v441, 1e-05
      %v450 = vrsqrt.pop %v442
      %v451 = vmul.f32 %v450, %v442
      %v452 = vmul.f32 %v451, %v450
      %v453 = vmul.f32 0.5, %v452
      %v454 = vsub.f32 1.5, %v453
      %v455 = vmul.f32 %v450, %v454
      %vm456 = vweird.f32 %v442
      %vm457 = vweird.f32 %v450
      %vm458 = vmor %vm456, %vm457
      %v459 = vsel %vm458, %v450, %v455
      %v460 = vrsqrt.pop %v443
      %v461 = vmul.f32 %v460, %v443
      %v462 = vmul.f32 %v461, %v460
      %v463 = vmul.f32 0.5, %v462
      %v464 = vsub.f32 1.5, %v463
      %v465 = vmul.f32 %v460, %v464
      %vm466 = vweird.f32 %v443
      %vm467 = vweird.f32 %v460
      %vm468 = vmor %vm466, %vm467
      %v469 = vsel %vm468, %v460, %v465
      %v470 = vrsqrt.pop %v444
      %v471 = vmul.f32 %v470, %v444
      %v472 = vmul.f32 %v471, %v470
      %v473 = vmul.f32 0.5, %v472
      %v474 = vsub.f32 1.5, %v473
      %v475 = vmul.f32 %v470, %v474
      %vm476 = vweird.f32 %v444
      %vm477 = vweird.f32 %v470
      %vm478 = vmor %vm476, %vm477
      %v479 = vsel %vm478, %v470, %v475
      %v480 = vrsqrt.pop %v445
      %v481 = vmul.f32 %v480, %v445
      %v482 = vmul.f32 %v481, %v480
      %v483 = vmul.f32 0.5, %v482
      %v484 = vsub.f32 1.5, %v483
      %v485 = vmul.f32 %v480, %v484
      %vm486 = vweird.f32 %v445
      %vm487 = vweird.f32 %v480
      %vm488 = vmor %vm486, %vm487
      %v489 = vsel %vm488, %v480, %v485
      %v490 = vrsqrt.pop %v446
      %v491 = vmul.f32 %v490, %v446
      %v492 = vmul.f32 %v491, %v490
      %v493 = vmul.f32 0.5, %v492
      %v494 = vsub.f32 1.5, %v493
      %v495 = vmul.f32 %v490, %v494
      %vm496 = vweird.f32 %v446
      %vm497 = vweird.f32 %v490
      %vm498 = vmor %vm496, %vm497
      %v499 = vsel %vm498, %v490, %v495
      %v500 = vrsqrt.pop %v447
      %v501 = vmul.f32 %v500, %v447
      %v502 = vmul.f32 %v501, %v500
      %v503 = vmul.f32 0.5, %v502
      %v504 = vsub.f32 1.5, %v503
      %v505 = vmul.f32 %v500, %v504
      %vm506 = vweird.f32 %v447
      %vm507 = vweird.f32 %v500
      %vm508 = vmor %vm506, %vm507
      %v509 = vsel %vm508, %v500, %v505
      %v510 = vrsqrt.pop %v448
      %v511 = vmul.f32 %v510, %v448
      %v512 = vmul.f32 %v511, %v510
      %v513 = vmul.f32 0.5, %v512
      %v514 = vsub.f32 1.5, %v513
      %v515 = vmul.f32 %v510, %v514
      %vm516 = vweird.f32 %v448
      %vm517 = vweird.f32 %v510
      %vm518 = vmor %vm516, %vm517
      %v519 = vsel %vm518, %v510, %v515
      %v520 = vrsqrt.pop %v449
      %v521 = vmul.f32 %v520, %v449
      %v522 = vmul.f32 %v521, %v520
      %v523 = vmul.f32 0.5, %v522
      %v524 = vsub.f32 1.5, %v523
      %v525 = vmul.f32 %v520, %v524
      %vm526 = vweird.f32 %v449
      %vm527 = vweird.f32 %v520
      %vm528 = vmor %vm526, %vm527
      %v529 = vsel %vm528, %v520, %v525
      %v530 = vld [vmem:[%s1] sm:$0xf]
      %v531 = vld [vmem:[%s2] sm:$0xf]
      %v540 = vunpack.c.l.b16 %v257
      %v541 = vunpack.c.l.b16 %v258
      %v542 = vunpack.c.l.b16 %v259
      %v543 = vunpack.c.l.b16 %v260
      %v544 = vunpack.c.l.b16 %v261
      %v545 = vunpack.c.l.b16 %v262
      %v546 = vunpack.c.l.b16 %v263
      %v547 = vunpack.c.l.b16 %v264
      %v548 = vpack.c.b16 %v541, %v540
      %v549 = vpack.c.b16 %v543, %v542
      %v550 = vpack.c.b16 %v545, %v544
      %v551 = vpack.c.b16 %v547, %v546
      %v553 = vsel %vm273, %v548, 0
      %v556 = vsel %vm273, %v549, 0
      %v559 = vsel %vm273, %v550, 0
      %v562 = vsel %vm273, %v551, 0
      %vm564 = vcmask 1043456
      %v566 = vsel %vm564, %v531, 0
      %568 = vmatpush.bf16.msra.mxu0 0
      %569 = vmatpush.bf16.msra.mxu0 0
      %570 = vmatpush.bf16.msra.mxu0 0
      %571 = vmatpush.bf16.msra.mxu0 0
      %572 = vmatpush.bf16.msra.mxu0 0
      %573 = vmatpush.bf16.msra.mxu0 0
      %574 = vmatpush.bf16.msra.mxu0 0
      %575 = vmatpush.bf16.msra.mxu0 %v566
      %576 = vmatmul.bf16.gmra.mxu0 %v553
      %v577 = vpop.f32.mrf.mxu0
      %v578 = vadd.f32 0.0, %v577
      %v579 = vpop.f32.mrf.mxu0
      %v580 = vadd.f32 0.0, %v579
      %581 = vmatmul.bf16.gmra.mxu0 %v556
      %v582 = vpop.f32.mrf.mxu0
      %v583 = vadd.f32 0.0, %v582
      %v584 = vpop.f32.mrf.mxu0
      %v585 = vadd.f32 0.0, %v584
      %586 = vmatmul.bf16.gmra.mxu0 %v559
      %v587 = vpop.f32.mrf.mxu0
      %v588 = vadd.f32 0.0, %v587
      %v589 = vpop.f32.mrf.mxu0
      %v590 = vadd.f32 0.0, %v589
      %591 = vmatmul.bf16.gmra.mxu0 %v562
      %v592 = vpop.f32.mrf.mxu0
      %v593 = vadd.f32 0.0, %v592
      %v594 = vpop.f32.mrf.mxu0
      %v595 = vadd.f32 0.0, %v594
      %596 = vdwg.mxu0
      %v605 = vunpack.c.l.b16 %v240
      %v606 = vunpack.c.l.b16 %v241
      %v607 = vunpack.c.l.b16 %v242
      %v608 = vunpack.c.l.b16 %v243
      %v609 = vunpack.c.l.b16 %v244
      %v610 = vunpack.c.l.b16 %v245
      %v611 = vunpack.c.l.b16 %v246
      %v612 = vunpack.c.l.b16 %v247
      %v613 = vpack.c.b16 %v606, %v605
      %v614 = vpack.c.b16 %v608, %v607
      %v615 = vpack.c.b16 %v610, %v609
      %v616 = vpack.c.b16 %v612, %v611
      %v618 = vsel %vm273, %v613, 0
      %v621 = vsel %vm273, %v614, 0
      %v624 = vsel %vm273, %v615, 0
      %v627 = vsel %vm273, %v616, 0
      %v630 = vsel %vm564, %v530, 0
      %632 = vmatpush.bf16.msra.mxu0 0
      %633 = vmatpush.bf16.msra.mxu0 0
      %634 = vmatpush.bf16.msra.mxu0 0
      %635 = vmatpush.bf16.msra.mxu0 0
      %636 = vmatpush.bf16.msra.mxu0 0
      %637 = vmatpush.bf16.msra.mxu0 0
      %638 = vmatpush.bf16.msra.mxu0 0
      %639 = vmatpush.bf16.msra.mxu0 %v630
      %640 = vmatmul.bf16.gmra.mxu0 %v618
      %v641 = vpop.f32.mrf.mxu0
      %v642 = vadd.f32 %v578, %v641
      %v643 = vpop.f32.mrf.mxu0
      %v644 = vadd.f32 %v580, %v643
      %645 = vmatmul.bf16.gmra.mxu0 %v621
      %v646 = vpop.f32.mrf.mxu0
      %v647 = vadd.f32 %v583, %v646
      %v648 = vpop.f32.mrf.mxu0
      %v649 = vadd.f32 %v585, %v648
      %650 = vmatmul.bf16.gmra.mxu0 %v624
      %v651 = vpop.f32.mrf.mxu0
      %v652 = vadd.f32 %v588, %v651
      %v653 = vpop.f32.mrf.mxu0
      %v654 = vadd.f32 %v590, %v653
      %655 = vmatmul.bf16.gmra.mxu0 %v627
      %v656 = vpop.f32.mrf.mxu0
      %v657 = vadd.f32 %v593, %v656
      %v658 = vpop.f32.mrf.mxu0
      %v659 = vadd.f32 %v595, %v658
      %660 = vdwg.mxu0
      %v661 = vmul.f32 %v459, %v642
      %v662 = vmul.f32 %v469, %v644
      %v663 = vmul.f32 %v479, %v647
      %v664 = vmul.f32 %v489, %v649
      %v665 = vmul.f32 %v499, %v652
      %v666 = vmul.f32 %v509, %v654
      %v667 = vmul.f32 %v519, %v657
      %v668 = vmul.f32 %v529, %v659
      %v669 = vmul.f32 %v459, %v410
      %v670 = vmul.f32 %v469, %v411
      %v671 = vmul.f32 %v479, %v412
      %v672 = vmul.f32 %v489, %v413
      %v673 = vmul.f32 %v499, %v414
      %v674 = vmul.f32 %v509, %v415
      %v675 = vmul.f32 %v519, %v416
      %v676 = vmul.f32 %v529, %v417
      %v677 = vld [vmem:[%s3] sm:$0x1]
      %v679 = vperm.slane %v677, 0
      %v681 = vmul.f32 %v669, %v679
      %v682 = vmul.f32 %v670, %v679
      %v683 = vmul.f32 %v671, %v679
      %v684 = vmul.f32 %v672, %v679
      %v685 = vmul.f32 %v673, %v679
      %v686 = vmul.f32 %v674, %v679
      %v687 = vmul.f32 %v675, %v679
      %v688 = vmul.f32 %v676, %v679
      %v689 = vsub.f32 %v661, %v681
      %v690 = vsub.f32 %v662, %v682
      %v691 = vsub.f32 %v663, %v683
      %v692 = vsub.f32 %v664, %v684
      %v693 = vsub.f32 %v665, %v685
      %v694 = vsub.f32 %v666, %v686
      %v695 = vsub.f32 %v667, %v687
      %v696 = vsub.f32 %v668, %v688
      %v697 = vld [vmem:[%s4] sm:$0x1]
      %v699 = vperm.slane %v697, 0
      %v701 = vadd.f32 %v689, %v699
      %v702 = vadd.f32 %v690, %v699
      %v703 = vadd.f32 %v691, %v699
      %v704 = vadd.f32 %v692, %v699
      %v705 = vadd.f32 %v693, %v699
      %v706 = vadd.f32 %v694, %v699
      %v707 = vadd.f32 %v695, %v699
      %v708 = vadd.f32 %v696, %v699
      %709 = vst.msk [vmem:[%s229] sm:$0xff] %vm273, %v701
      %710 = vst.msk [vmem:[%s229 + $0x8] sm:$0xff] %vm273, %v702
      %711 = vst.msk [vmem:[%s229 + $0x10] sm:$0xff] %vm273, %v703
      %712 = vst.msk [vmem:[%s229 + $0x18] sm:$0xff] %vm273, %v704
      %713 = vst.msk [vmem:[%s229 + $0x20] sm:$0xff] %vm273, %v705
      %714 = vst.msk [vmem:[%s229 + $0x28] sm:$0xff] %vm273, %v706
      %715 = vst.msk [vmem:[%s229 + $0x30] sm:$0xff] %vm273, %v707
      %716 = vst.msk [vmem:[%s229 + $0x38] sm:$0xff] %vm273, %v708
      %s717 = smul.u32 8, %s16
      %p718 = scmp.lt.s32.totalorder %s717, 15
      %s719 = scalar_select %p718, %s717, 15
      %s720 = smul.addr %s719, 8
      %s721 = scalar_lea.vmem %s5, %s720
      // Predicated region
      $region41: #{tpu_custom_call.1} parent=39 // pred_check
        %p722 = pneg %p144
      $region42: #{tpu_custom_call.1} parent=39 // pred_check_branch
        %724 = sbr.rel (%p722) target = $region44
      $region43: #{tpu_custom_call.1} parent=39 // pred_region
        %s725 = smul.u32 8, %s16
      $region44: #{tpu_custom_call.1} parent=39 // pred_fallthru
        _
    $region40: #{tpu_custom_call.1} parent=5 // pred_fallthru
      _
    %p726 = scmp.le.s32.totalorder 2, %s11
    // Predicated region
    $region45: #{tpu_custom_call.1} parent=5 // pred_check
      %p727 = pneg %p726
    $region46: #{tpu_custom_call.1} parent=5 // pred_check_branch
      %729 = sbr.rel (%p727) target = $region48
    $region47: #{tpu_custom_call.1} parent=5 // pred_region
      %s730 = ssub.s32 %s11, 2
      // Predicated region
      $region49: #{tpu_custom_call.1} parent=47 // pred_check
        %p731 = pneg %p150
      $region50: #{tpu_custom_call.1} parent=47 // pred_check_branch
        %733 = sbr.rel (%p731) target = $region52
      $region51: #{tpu_custom_call.1} parent=47 // pred_region
        %s734 = smul.u32 8, %s17
        %p735 = scmp.lt.s32.totalorder %s734, 15
        %s736 = scalar_select %p735, %s734, 15
        %s737 = smul.addr %s736, 8
        %s738 = scalar_lea.vmem %s5, %s737
      $region52: #{tpu_custom_call.1} parent=47 // pred_fallthru
        _
    $region48: #{tpu_custom_call.1} parent=5 // pred_fallthru
      _
  $region6: #{tpu_custom_call.1} parent=0 // loop_footer
    %s15 = sadd.s32 1, %s11
  $region7: #{tpu_custom_call.1} parent=0 // loop_footer_branch
    %10 = sbr.rel target = $region3
  $region8: #{tpu_custom_call.1} parent=0 // loop_exit
    _

</llo_original>
